<compile_context>
chip_gen: v6e
topology: v6e:2x2x1
jax: 0.10.0
libtpu: 0.0.40
codegen_flags: <defaults>
</compile_context>

<pallas_src>
import functools

import jax
import jax.numpy as jnp
from jax.experimental import pallas as pl
from jax.experimental.pallas import tpu as pltpu


# ------------------------------ kernel helpers -------------------------------

def _elu(x):
    return jnp.where(x > 0, x, jnp.exp(jnp.minimum(x, 0.0)) - 1.0)


def _gated(pqr, cout):
    """TemporalConv activation: relu(P * sigmoid(Q) + R) with P|Q|R concatenated on lanes."""
    p = pqr[:, :cout]
    q = pqr[:, cout:2 * cout]
    r = pqr[:, 2 * cout:]
    return jnp.maximum(p * jax.nn.sigmoid(q) + r, 0.0)


# ------------------------------ fused Pallas kernel --------------------------

def _stgcn_fused_kernel(x_ref, l_ref,
                        w_tc1_ref, b_tc1_ref,
                        w_cheb_ref, b_cheb_ref,
                        w_tc2_ref, b_tc2_ref,
                        bn_scale_ref, bn_shift_ref,
                        w1_ref, b1_ref, w2_ref, b2_ref,
                        o_ref, *, num_nodes, t_in, k, hidden, features):
    N, K, H, F = num_nodes, k, hidden, features
    T1 = t_in - K + 1          # time steps after TemporalConv 1
    T2 = T1 - K + 1            # time steps after TemporalConv 2 (== 1 here)
    f32 = jnp.float32

    # ---- TemporalConv 1: in-kernel im2col (static slices) + one merged gated matmul.
    # Rows are time-major (row = t*N + n); columns follow the conv weight layout [dt*Cin + c].
    cols1 = jnp.concatenate(
        [jnp.concatenate([x_ref[t + dt] for dt in range(K)], axis=-1)   # (N, K*Cin)
         for t in range(T1)],
        axis=0)                                                         # (T1*N, K*Cin)
    pqr1 = (jnp.dot(cols1, w_tc1_ref[...], preferred_element_type=f32)
            + b_tc1_ref[...])                                           # (T1*N, 3*H)
    t0 = _gated(pqr1, H)                                                # (T1*N, H)

    # ---- ChebConv (K=3) over ALL T1 time slices at once, then the ReLU STConv applies.
    # Node-major column slab: x0[:, t*H:(t+1)*H] is time slice t, so one L @ x0 applies
    # the graph operator to every slice in a single MXU pass.
    L = l_ref[...]                                                      # (N, N)
    x0 = jnp.concatenate([t0[t * N:(t + 1) * N, :] for t in range(T1)], axis=-1)   # (N, T1*H)
    x1 = jnp.dot(L, x0, preferred_element_type=f32)
    x2 = 2.0 * jnp.dot(L, x1, preferred_element_type=f32) - x0
    z = jnp.concatenate(
        [jnp.concatenate([x0[:, t * H:(t + 1) * H],
                          x1[:, t * H:(t + 1) * H],
                          x2[:, t * H:(t + 1) * H]], axis=-1)           # (N, 3*H)
         for t in range(T1)],
        axis=0)                                                         # (T1*N, 3*H)
    cheb = jnp.maximum(
        jnp.dot(z, w_cheb_ref[...], preferred_element_type=f32) + b_cheb_ref[...],
        0.0)                                                            # (T1*N, H)

    # ---- TemporalConv 2: im2col over the T1 slices + one merged gated matmul.
    cols2 = jnp.concatenate(
        [jnp.concatenate([cheb[(t + dt) * N:(t + dt + 1) * N, :] for dt in range(K)],
                         axis=-1)                                       # (N, K*H)
         for t in range(T2)],
        axis=0)                                                         # (T2*N, K*H)
    pqr2 = (jnp.dot(cols2, w_tc2_ref[...], preferred_element_type=f32)
            + b_tc2_ref[...])                                           # (T2*N, 3*F)
    h = _gated(pqr2, F)                                                 # (N, F)  (T2 == 1)

    # ---- BatchNorm2d(num_nodes) (eval-mode per-node affine) + per-node MLP head.
    h = h * bn_scale_ref[...] + bn_shift_ref[...]
    k1 = _elu(h)
    k1 = jnp.dot(k1, w1_ref[...], preferred_element_type=f32) + b1_ref[...]
    # TODO(synk): torch.nn.Dropout(0.3) is stochastic in train mode; eval-mode identity here.
    k1 = _elu(k1)
    o_ref[...] = jnp.dot(k1, w2_ref[...], preferred_element_type=f32) + b2_ref[...]


# ------------------------------ pallas_call wrapper ---------------------------

def stgcn_forward(params, x, l_hat, *, num_nodes, in_channels, hidden, features, k=3):
    B, T, N, Cin = x.shape
    assert B == 1, "h.reshape(num_nodes, features) in the reference implies batch == 1"
    assert N == num_nodes and Cin == in_channels
    assert T - 2 * (k - 1) == 1, "reference reshape(num_nodes, features) implies one output step"

    kernel = functools.partial(_stgcn_fused_kernel, num_nodes=N, t_in=T, k=k,
                               hidden=hidden, features=features)
    operands = (x[0], l_hat,
                params["tc1_w"], params["tc1_b"],
                params["cheb_w"], params["cheb_b"],
                params["tc2_w"], params["tc2_b"],
                params["bn_scale"], params["bn_shift"],
                params["w1t"], params["b1"], params["w2t"], params["b2"])

    return pl.pallas_call(
        kernel,
        out_shape=jax.ShapeDtypeStruct((N, 1), jnp.float32),
        # Gridless call: the whole problem (a few tens of KB) lives in VMEM; no grid-loop
        # scaffolding, no per-step overhead, no HBM round-trips between stages.
        in_specs=[pl.BlockSpec(memory_space=pltpu.MemorySpace.VMEM) for _ in operands],
        out_specs=pl.BlockSpec(memory_space=pltpu.MemorySpace.VMEM),
    )(*operands)


# ------------------------------ plain-JAX setup glue ---------------------------

def conv_w_to_mat(w):
    """torch Conv2d weight (Cout, Cin, 1, K) -> matmul weight (K*Cin, Cout)."""
    Cout, Cin, _, K = w.shape
    return jnp.transpose(w[:, :, 0, :], (2, 1, 0)).reshape(K * Cin, Cout)


def build_scaled_laplacian(edge_index, edge_weight, num_nodes, lambda_max=2.0):
    """Dense \\hat{L} = (2/lambda_max) * (I - D^{-1/2} A D^{-1/2}) - I (ChebConv 'sym')."""
    row, col = edge_index[0], edge_index[1]           # source, target
    deg = jnp.zeros((num_nodes,), jnp.float32).at[row].add(edge_weight)
    dinv = jnp.where(deg > 0, 1.0 / jnp.sqrt(deg), 0.0)
    w_norm = -dinv[row] * edge_weight * dinv[col]
    # message passing: out[target] += norm * x[source]  =>  L[target, source]
    L = jnp.zeros((num_nodes, num_nodes), jnp.float32).at[col, row].add(w_norm)
    L = L + jnp.eye(num_nodes, dtype=jnp.float32)
    return (2.0 / lambda_max) * L - jnp.eye(num_nodes, dtype=jnp.float32)


def init_params(key, num_nodes, in_channels, hidden, features, K=3):
    """All weight re-layouts (conv->matmul, P|Q|R concat, Cheb stack) are done ONCE here."""
    ks = iter(jax.random.split(key, 24))

    def gated_conv_params(cin, cout):
        ws, bs = [], []
        for _ in range(3):                               # conv_1, conv_2, conv_3
            w = 0.1 * jax.random.normal(next(ks), (cout, cin, 1, K), jnp.float32)
            b = 0.1 * jax.random.normal(next(ks), (cout,), jnp.float32)
            ws.append(conv_w_to_mat(w))
            bs.append(b.reshape(1, cout))
        return jnp.concatenate(ws, axis=1), jnp.concatenate(bs, axis=1)   # (K*cin,3cout),(1,3cout)

    tc1_w, tc1_b = gated_conv_params(in_channels, hidden)
    tc2_w, tc2_b = gated_conv_params(hidden, features)
    cheb_w3 = 0.1 * jax.random.normal(next(ks), (3, hidden, hidden), jnp.float32)

    return {
        "tc1_w": tc1_w, "tc1_b": tc1_b,
        # ChebConv (hidden -> hidden, K=3): stacked so [Tx0|Tx1|Tx2] @ W == sum_k Txk @ Wk
        "cheb_w": cheb_w3.reshape(3 * hidden, hidden),
        "cheb_b": 0.1 * jax.random.normal(next(ks), (1, hidden), jnp.float32),
        "tc2_w": tc2_w, "tc2_b": tc2_b,
        # BatchNorm2d(num_nodes) in eval mode: gamma=1, beta=0, mean=0, var=1
        "bn_scale": jnp.full((num_nodes, 1), 1.0 / jnp.sqrt(1.0 + 1e-5), jnp.float32),
        "bn_shift": jnp.zeros((num_nodes, 1), jnp.float32),
        # Linear(features, 10), Linear(10, 1)
        "w1t": 0.1 * jax.random.normal(next(ks), (features, 10), jnp.float32),
        "b1": 0.1 * jax.random.normal(next(ks), (1, 10), jnp.float32),
        "w2t": 0.1 * jax.random.normal(next(ks), (10, 1), jnp.float32),
        "b2": 0.1 * jax.random.normal(next(ks), (1, 1), jnp.float32),
    }


def stgcn_reference(params, x, l_hat, *, hidden, features, k=3):
    """Pure-jnp mirror of the fused kernel (correctness check only)."""
    T, N = x.shape[1], x.shape[2]
    xt, K = x[0], k

    def gated(cols, w, b, cout):
        pqr = cols @ w + b
        return jnp.maximum(pqr[:, :cout] * jax.nn.sigmoid(pqr[:, cout:2 * cout])
                           + pqr[:, 2 * cout:], 0.0)

    T1 = T - K + 1
    cols1 = jnp.concatenate(
        [jnp.concatenate([xt[t + dt] for dt in range(K)], axis=-1) for t in range(T1)], axis=0)
    t0 = gated(cols1, params["tc1_w"], params["tc1_b"], hidden)

    outs = []
    for t in range(T1):
        xs = t0[t * N:(t + 1) * N]
        tx1 = l_hat @ xs
        tx2 = 2.0 * (l_hat @ tx1) - xs
        z = jnp.concatenate([xs, tx1, tx2], axis=-1)
        outs.append(jnp.maximum(z @ params["cheb_w"] + params["cheb_b"], 0.0))

    T2 = T1 - K + 1
    cols2 = jnp.concatenate(
        [jnp.concatenate([outs[t + dt] for dt in range(K)], axis=-1) for t in range(T2)], axis=0)
    h = gated(cols2, params["tc2_w"], params["tc2_b"], features)
    h = h * params["bn_scale"] + params["bn_shift"]
    k1 = _elu(h)
    k1 = k1 @ params["w1t"] + params["b1"]
    k1 = _elu(k1)
    return k1 @ params["w2t"] + params["b2"]


# ----------------------------------- main -----------------------------------

if __name__ == "__main__":
    num_nodes = 16
    in_channels = 4
    hidden = 8
    features = 16
    T = 5          # two temporal convs with kernel 3 => T_out = 1, so the reshape works
    B = 1

    key = jax.random.PRNGKey(0)
    k_x, k_w, k_ew = jax.random.split(key, 3)

    # deterministic input (B, T, N, C_in)
    x = jax.random.normal(k_x, (B, T, num_nodes, in_channels), jnp.float32)

    # deterministic ring graph (both directions), no self loops
    src = jnp.arange(num_nodes, dtype=jnp.int32)
    dst = (src + 1) % num_nodes
    edge_index = jnp.stack([jnp.concatenate([src, dst]),
                            jnp.concatenate([dst, src])], axis=0)     # (2, E)
    edge_weight = 0.5 + jax.random.uniform(k_ew, (edge_index.shape[1],), jnp.float32)

    l_hat = build_scaled_laplacian(edge_index, edge_weight, num_nodes)
    params = init_params(k_w, num_nodes, in_channels, hidden, features)

    fwd = jax.jit(functools.partial(stgcn_forward, num_nodes=num_nodes,
                                    in_channels=in_channels, hidden=hidden,
                                    features=features))
    result = jax.block_until_ready(fwd(params, x, l_hat))

    assert result.shape == (num_nodes, 1)
    assert bool(jnp.all(jnp.isfinite(result)))

    ref = stgcn_reference(params, x, l_hat, hidden=hidden, features=features)
    assert float(jnp.max(jnp.abs(result - ref))) < 1e-3, "Pallas output mismatch vs jnp reference"

    print("KERNEL_OK")
</pallas_src>

<mosaic_0001>
module attributes {stable_mosaic.version = 11 : i64} {
  func.func @_stgcn_fused_kernel(%arg0: memref<5x16x4xf32, #tpu.memory_space<vmem>>, %arg1: memref<16x16xf32, #tpu.memory_space<vmem>>, %arg2: memref<12x24xf32, #tpu.memory_space<vmem>>, %arg3: memref<1x24xf32, #tpu.memory_space<vmem>>, %arg4: memref<24x8xf32, #tpu.memory_space<vmem>>, %arg5: memref<1x8xf32, #tpu.memory_space<vmem>>, %arg6: memref<24x48xf32, #tpu.memory_space<vmem>>, %arg7: memref<1x48xf32, #tpu.memory_space<vmem>>, %arg8: memref<16x1xf32, #tpu.memory_space<vmem>>, %arg9: memref<16x1xf32, #tpu.memory_space<vmem>>, %arg10: memref<16x10xf32, #tpu.memory_space<vmem>>, %arg11: memref<1x10xf32, #tpu.memory_space<vmem>>, %arg12: memref<10x1xf32, #tpu.memory_space<vmem>>, %arg13: memref<1x1xf32, #tpu.memory_space<vmem>>, %arg14: memref<16x1xf32, #tpu.memory_space<vmem>>) attributes {dimension_semantics = [], scalar_prefetch = 0 : i64, scratch_operands = 0 : i64, tpu.core_type = #tpu.core_type<tc>} {
    %c0 = arith.constant 0 : index
    %c0_0 = arith.constant 0 : index
    %c0_1 = arith.constant 0 : index
    %0 = vector.load %arg0[%c0, %c0_0, %c0_1] : memref<5x16x4xf32, #tpu.memory_space<vmem>>, vector<1x16x4xf32>
    %1 = vector.shape_cast %0 : vector<1x16x4xf32> to vector<16x4xf32>
    %c1 = arith.constant 1 : index
    %c0_2 = arith.constant 0 : index
    %c0_3 = arith.constant 0 : index
    %2 = vector.load %arg0[%c1, %c0_2, %c0_3] : memref<5x16x4xf32, #tpu.memory_space<vmem>>, vector<1x16x4xf32>
    %3 = vector.shape_cast %2 : vector<1x16x4xf32> to vector<16x4xf32>
    %c2 = arith.constant 2 : index
    %c0_4 = arith.constant 0 : index
    %c0_5 = arith.constant 0 : index
    %4 = vector.load %arg0[%c2, %c0_4, %c0_5] : memref<5x16x4xf32, #tpu.memory_space<vmem>>, vector<1x16x4xf32>
    %5 = vector.shape_cast %4 : vector<1x16x4xf32> to vector<16x4xf32>
    %6 = tpu.concatenate %1, %3, %5 in 1 : vector<16x4xf32>, vector<16x4xf32>, vector<16x4xf32> -> vector<16x12xf32>
    %c1_6 = arith.constant 1 : index
    %c0_7 = arith.constant 0 : index
    %c0_8 = arith.constant 0 : index
    %7 = vector.load %arg0[%c1_6, %c0_7, %c0_8] : memref<5x16x4xf32, #tpu.memory_space<vmem>>, vector<1x16x4xf32>
    %8 = vector.shape_cast %7 : vector<1x16x4xf32> to vector<16x4xf32>
    %c2_9 = arith.constant 2 : index
    %c0_10 = arith.constant 0 : index
    %c0_11 = arith.constant 0 : index
    %9 = vector.load %arg0[%c2_9, %c0_10, %c0_11] : memref<5x16x4xf32, #tpu.memory_space<vmem>>, vector<1x16x4xf32>
    %10 = vector.shape_cast %9 : vector<1x16x4xf32> to vector<16x4xf32>
    %c3 = arith.constant 3 : index
    %c0_12 = arith.constant 0 : index
    %c0_13 = arith.constant 0 : index
    %11 = vector.load %arg0[%c3, %c0_12, %c0_13] : memref<5x16x4xf32, #tpu.memory_space<vmem>>, vector<1x16x4xf32>
    %12 = vector.shape_cast %11 : vector<1x16x4xf32> to vector<16x4xf32>
    %13 = tpu.concatenate %8, %10, %12 in 1 : vector<16x4xf32>, vector<16x4xf32>, vector<16x4xf32> -> vector<16x12xf32>
    %c2_14 = arith.constant 2 : index
    %c0_15 = arith.constant 0 : index
    %c0_16 = arith.constant 0 : index
    %14 = vector.load %arg0[%c2_14, %c0_15, %c0_16] : memref<5x16x4xf32, #tpu.memory_space<vmem>>, vector<1x16x4xf32>
    %15 = vector.shape_cast %14 : vector<1x16x4xf32> to vector<16x4xf32>
    %c3_17 = arith.constant 3 : index
    %c0_18 = arith.constant 0 : index
    %c0_19 = arith.constant 0 : index
    %16 = vector.load %arg0[%c3_17, %c0_18, %c0_19] : memref<5x16x4xf32, #tpu.memory_space<vmem>>, vector<1x16x4xf32>
    %17 = vector.shape_cast %16 : vector<1x16x4xf32> to vector<16x4xf32>
    %c4 = arith.constant 4 : index
    %c0_20 = arith.constant 0 : index
    %c0_21 = arith.constant 0 : index
    %18 = vector.load %arg0[%c4, %c0_20, %c0_21] : memref<5x16x4xf32, #tpu.memory_space<vmem>>, vector<1x16x4xf32>
    %19 = vector.shape_cast %18 : vector<1x16x4xf32> to vector<16x4xf32>
    %20 = tpu.concatenate %15, %17, %19 in 1 : vector<16x4xf32>, vector<16x4xf32>, vector<16x4xf32> -> vector<16x12xf32>
    %21 = tpu.concatenate %6, %13, %20 in 0 : vector<16x12xf32>, vector<16x12xf32>, vector<16x12xf32> -> vector<48x12xf32>
    %c0_22 = arith.constant 0 : index
    %c0_23 = arith.constant 0 : index
    %22 = vector.load %arg2[%c0_22, %c0_23] : memref<12x24xf32, #tpu.memory_space<vmem>>, vector<12x24xf32>
    %cst = arith.constant dense<0.000000e+00> : vector<48x24xf32>
    %23 = tpu.matmul %21, %22, %cst {dimension_numbers = #tpu.dot_dimension_numbers<[1], [0], [0], [1], [0, 0, 1, 1], [], []>} : vector<48x12xf32>, vector<12x24xf32>, vector<48x24xf32> -> vector<48x24xf32>
    %c0_24 = arith.constant 0 : index
    %c0_25 = arith.constant 0 : index
    %24 = vector.load %arg3[%c0_24, %c0_25] : memref<1x24xf32, #tpu.memory_space<vmem>>, vector<1x24xf32>
    %25 = vector.broadcast %24 : vector<1x24xf32> to vector<48x24xf32>
    %26 = arith.addf %23, %25 : vector<48x24xf32>
    %27 = vector.extract_strided_slice %26 {offsets = [0, 0], sizes = [48, 8], strides = [1, 1]} : vector<48x24xf32> to vector<48x8xf32>
    %28 = vector.extract_strided_slice %26 {offsets = [0, 8], sizes = [48, 8], strides = [1, 1]} : vector<48x24xf32> to vector<48x8xf32>
    %29 = vector.extract_strided_slice %26 {offsets = [0, 16], sizes = [48, 8], strides = [1, 1]} : vector<48x24xf32> to vector<48x8xf32>
    %30 = arith.negf %28 : vector<48x8xf32>
    %31 = math.exp %30 : vector<48x8xf32>
    %cst_26 = arith.constant 1.000000e+00 : f32
    %32 = vector.broadcast %cst_26 : f32 to vector<48x8xf32>
    %33 = arith.addf %32, %31 : vector<48x8xf32>
    %34 = arith.divf %32, %33 : vector<48x8xf32>
    %35 = arith.mulf %27, %34 : vector<48x8xf32>
    %36 = arith.addf %35, %29 : vector<48x8xf32>
    %cst_27 = arith.constant 0.000000e+00 : f32
    %37 = vector.broadcast %cst_27 : f32 to vector<48x8xf32>
    %38 = arith.maximumf %36, %37 : vector<48x8xf32>
    %c0_28 = arith.constant 0 : index
    %c0_29 = arith.constant 0 : index
    %39 = vector.load %arg1[%c0_28, %c0_29] : memref<16x16xf32, #tpu.memory_space<vmem>>, vector<16x16xf32>
    %40 = vector.extract_strided_slice %38 {offsets = [0, 0], sizes = [16, 8], strides = [1, 1]} : vector<48x8xf32> to vector<16x8xf32>
    %41 = vector.extract_strided_slice %38 {offsets = [16, 0], sizes = [16, 8], strides = [1, 1]} : vector<48x8xf32> to vector<16x8xf32>
    %42 = vector.extract_strided_slice %38 {offsets = [32, 0], sizes = [16, 8], strides = [1, 1]} : vector<48x8xf32> to vector<16x8xf32>
    %43 = tpu.concatenate %40, %41, %42 in 1 : vector<16x8xf32>, vector<16x8xf32>, vector<16x8xf32> -> vector<16x24xf32>
    %cst_30 = arith.constant dense<0.000000e+00> : vector<16x24xf32>
    %44 = tpu.matmul %39, %43, %cst_30 {dimension_numbers = #tpu.dot_dimension_numbers<[1], [0], [0], [1], [0, 0, 1, 1], [], []>} : vector<16x16xf32>, vector<16x24xf32>, vector<16x24xf32> -> vector<16x24xf32>
    %cst_31 = arith.constant dense<0.000000e+00> : vector<16x24xf32>
    %45 = tpu.matmul %39, %44, %cst_31 {dimension_numbers = #tpu.dot_dimension_numbers<[1], [0], [0], [1], [0, 0, 1, 1], [], []>} : vector<16x16xf32>, vector<16x24xf32>, vector<16x24xf32> -> vector<16x24xf32>
    %cst_32 = arith.constant 2.000000e+00 : f32
    %46 = vector.broadcast %cst_32 : f32 to vector<16x24xf32>
    %47 = arith.mulf %46, %45 : vector<16x24xf32>
    %48 = arith.subf %47, %43 : vector<16x24xf32>
    %49 = vector.extract_strided_slice %43 {offsets = [0, 0], sizes = [16, 8], strides = [1, 1]} : vector<16x24xf32> to vector<16x8xf32>
    %50 = vector.extract_strided_slice %44 {offsets = [0, 0], sizes = [16, 8], strides = [1, 1]} : vector<16x24xf32> to vector<16x8xf32>
    %51 = vector.extract_strided_slice %48 {offsets = [0, 0], sizes = [16, 8], strides = [1, 1]} : vector<16x24xf32> to vector<16x8xf32>
    %52 = tpu.concatenate %49, %50, %51 in 1 : vector<16x8xf32>, vector<16x8xf32>, vector<16x8xf32> -> vector<16x24xf32>
    %53 = vector.extract_strided_slice %43 {offsets = [0, 8], sizes = [16, 8], strides = [1, 1]} : vector<16x24xf32> to vector<16x8xf32>
    %54 = vector.extract_strided_slice %44 {offsets = [0, 8], sizes = [16, 8], strides = [1, 1]} : vector<16x24xf32> to vector<16x8xf32>
    %55 = vector.extract_strided_slice %48 {offsets = [0, 8], sizes = [16, 8], strides = [1, 1]} : vector<16x24xf32> to vector<16x8xf32>
    %56 = tpu.concatenate %53, %54, %55 in 1 : vector<16x8xf32>, vector<16x8xf32>, vector<16x8xf32> -> vector<16x24xf32>
    %57 = vector.extract_strided_slice %43 {offsets = [0, 16], sizes = [16, 8], strides = [1, 1]} : vector<16x24xf32> to vector<16x8xf32>
    %58 = vector.extract_strided_slice %44 {offsets = [0, 16], sizes = [16, 8], strides = [1, 1]} : vector<16x24xf32> to vector<16x8xf32>
    %59 = vector.extract_strided_slice %48 {offsets = [0, 16], sizes = [16, 8], strides = [1, 1]} : vector<16x24xf32> to vector<16x8xf32>
    %60 = tpu.concatenate %57, %58, %59 in 1 : vector<16x8xf32>, vector<16x8xf32>, vector<16x8xf32> -> vector<16x24xf32>
    %61 = tpu.concatenate %52, %56, %60 in 0 : vector<16x24xf32>, vector<16x24xf32>, vector<16x24xf32> -> vector<48x24xf32>
    %c0_33 = arith.constant 0 : index
    %c0_34 = arith.constant 0 : index
    %62 = vector.load %arg4[%c0_33, %c0_34] : memref<24x8xf32, #tpu.memory_space<vmem>>, vector<24x8xf32>
    %cst_35 = arith.constant dense<0.000000e+00> : vector<48x8xf32>
    %63 = tpu.matmul %61, %62, %cst_35 {dimension_numbers = #tpu.dot_dimension_numbers<[1], [0], [0], [1], [0, 0, 1, 1], [], []>} : vector<48x24xf32>, vector<24x8xf32>, vector<48x8xf32> -> vector<48x8xf32>
    %c0_36 = arith.constant 0 : index
    %c0_37 = arith.constant 0 : index
    %64 = vector.load %arg5[%c0_36, %c0_37] : memref<1x8xf32, #tpu.memory_space<vmem>>, vector<1x8xf32>
    %65 = vector.broadcast %64 : vector<1x8xf32> to vector<48x8xf32>
    %66 = arith.addf %63, %65 : vector<48x8xf32>
    %cst_38 = arith.constant 0.000000e+00 : f32
    %67 = vector.broadcast %cst_38 : f32 to vector<48x8xf32>
    %68 = arith.maximumf %66, %67 : vector<48x8xf32>
    %69 = vector.extract_strided_slice %68 {offsets = [0, 0], sizes = [16, 8], strides = [1, 1]} : vector<48x8xf32> to vector<16x8xf32>
    %70 = vector.extract_strided_slice %68 {offsets = [16, 0], sizes = [16, 8], strides = [1, 1]} : vector<48x8xf32> to vector<16x8xf32>
    %71 = vector.extract_strided_slice %68 {offsets = [32, 0], sizes = [16, 8], strides = [1, 1]} : vector<48x8xf32> to vector<16x8xf32>
    %72 = tpu.concatenate %69, %70, %71 in 1 : vector<16x8xf32>, vector<16x8xf32>, vector<16x8xf32> -> vector<16x24xf32>
    %c0_39 = arith.constant 0 : index
    %c0_40 = arith.constant 0 : index
    %73 = vector.load %arg6[%c0_39, %c0_40] : memref<24x48xf32, #tpu.memory_space<vmem>>, vector<24x48xf32>
    %cst_41 = arith.constant dense<0.000000e+00> : vector<16x48xf32>
    %74 = tpu.matmul %72, %73, %cst_41 {dimension_numbers = #tpu.dot_dimension_numbers<[1], [0], [0], [1], [0, 0, 1, 1], [], []>} : vector<16x24xf32>, vector<24x48xf32>, vector<16x48xf32> -> vector<16x48xf32>
    %c0_42 = arith.constant 0 : index
    %c0_43 = arith.constant 0 : index
    %75 = vector.load %arg7[%c0_42, %c0_43] : memref<1x48xf32, #tpu.memory_space<vmem>>, vector<1x48xf32>
    %76 = vector.broadcast %75 : vector<1x48xf32> to vector<16x48xf32>
    %77 = arith.addf %74, %76 : vector<16x48xf32>
    %78 = vector.extract_strided_slice %77 {offsets = [0, 0], sizes = [16, 16], strides = [1, 1]} : vector<16x48xf32> to vector<16x16xf32>
    %79 = vector.extract_strided_slice %77 {offsets = [0, 16], sizes = [16, 16], strides = [1, 1]} : vector<16x48xf32> to vector<16x16xf32>
    %80 = vector.extract_strided_slice %77 {offsets = [0, 32], sizes = [16, 16], strides = [1, 1]} : vector<16x48xf32> to vector<16x16xf32>
    %81 = arith.negf %79 : vector<16x16xf32>
    %82 = math.exp %81 : vector<16x16xf32>
    %cst_44 = arith.constant 1.000000e+00 : f32
    %83 = vector.broadcast %cst_44 : f32 to vector<16x16xf32>
    %84 = arith.addf %83, %82 : vector<16x16xf32>
    %85 = arith.divf %83, %84 : vector<16x16xf32>
    %86 = arith.mulf %78, %85 : vector<16x16xf32>
    %87 = arith.addf %86, %80 : vector<16x16xf32>
    %cst_45 = arith.constant 0.000000e+00 : f32
    %88 = vector.broadcast %cst_45 : f32 to vector<16x16xf32>
    %89 = arith.maximumf %87, %88 : vector<16x16xf32>
    %c0_46 = arith.constant 0 : index
    %c0_47 = arith.constant 0 : index
    %90 = vector.load %arg8[%c0_46, %c0_47] : memref<16x1xf32, #tpu.memory_space<vmem>>, vector<16x1xf32>
    %91 = vector.broadcast %90 : vector<16x1xf32> to vector<16x16xf32>
    %92 = arith.mulf %89, %91 : vector<16x16xf32>
    %c0_48 = arith.constant 0 : index
    %c0_49 = arith.constant 0 : index
    %93 = vector.load %arg9[%c0_48, %c0_49] : memref<16x1xf32, #tpu.memory_space<vmem>>, vector<16x1xf32>
    %94 = vector.broadcast %93 : vector<16x1xf32> to vector<16x16xf32>
    %95 = arith.addf %92, %94 : vector<16x16xf32>
    %cst_50 = arith.constant 0.000000e+00 : f32
    %96 = vector.broadcast %cst_50 : f32 to vector<16x16xf32>
    %97 = arith.cmpf ogt, %95, %96 : vector<16x16xf32>
    %cst_51 = arith.constant 0.000000e+00 : f32
    %98 = vector.broadcast %cst_51 : f32 to vector<16x16xf32>
    %99 = arith.minimumf %95, %98 : vector<16x16xf32>
    %100 = math.exp %99 : vector<16x16xf32>
    %cst_52 = arith.constant 1.000000e+00 : f32
    %101 = vector.broadcast %cst_52 : f32 to vector<16x16xf32>
    %102 = arith.subf %100, %101 : vector<16x16xf32>
    %103 = arith.select %97, %95, %102 : vector<16x16xi1>, vector<16x16xf32>
    %c0_53 = arith.constant 0 : index
    %c0_54 = arith.constant 0 : index
    %104 = vector.load %arg10[%c0_53, %c0_54] : memref<16x10xf32, #tpu.memory_space<vmem>>, vector<16x10xf32>
    %cst_55 = arith.constant dense<0.000000e+00> : vector<16x10xf32>
    %105 = tpu.matmul %103, %104, %cst_55 {dimension_numbers = #tpu.dot_dimension_numbers<[1], [0], [0], [1], [0, 0, 1, 1], [], []>} : vector<16x16xf32>, vector<16x10xf32>, vector<16x10xf32> -> vector<16x10xf32>
    %c0_56 = arith.constant 0 : index
    %c0_57 = arith.constant 0 : index
    %106 = vector.load %arg11[%c0_56, %c0_57] : memref<1x10xf32, #tpu.memory_space<vmem>>, vector<1x10xf32>
    %107 = vector.broadcast %106 : vector<1x10xf32> to vector<16x10xf32>
    %108 = arith.addf %105, %107 : vector<16x10xf32>
    %cst_58 = arith.constant 0.000000e+00 : f32
    %109 = vector.broadcast %cst_58 : f32 to vector<16x10xf32>
    %110 = arith.cmpf ogt, %108, %109 : vector<16x10xf32>
    %cst_59 = arith.constant 0.000000e+00 : f32
    %111 = vector.broadcast %cst_59 : f32 to vector<16x10xf32>
    %112 = arith.minimumf %108, %111 : vector<16x10xf32>
    %113 = math.exp %112 : vector<16x10xf32>
    %cst_60 = arith.constant 1.000000e+00 : f32
    %114 = vector.broadcast %cst_60 : f32 to vector<16x10xf32>
    %115 = arith.subf %113, %114 : vector<16x10xf32>
    %116 = arith.select %110, %108, %115 : vector<16x10xi1>, vector<16x10xf32>
    %c0_61 = arith.constant 0 : index
    %c0_62 = arith.constant 0 : index
    %117 = vector.load %arg12[%c0_61, %c0_62] : memref<10x1xf32, #tpu.memory_space<vmem>>, vector<10x1xf32>
    %cst_63 = arith.constant dense<0.000000e+00> : vector<16x1xf32>
    %118 = tpu.matmul %116, %117, %cst_63 {dimension_numbers = #tpu.dot_dimension_numbers<[1], [0], [0], [1], [0, 0, 1, 1], [], []>} : vector<16x10xf32>, vector<10x1xf32>, vector<16x1xf32> -> vector<16x1xf32>
    %c0_64 = arith.constant 0 : index
    %c0_65 = arith.constant 0 : index
    %119 = vector.load %arg13[%c0_64, %c0_65] : memref<1x1xf32, #tpu.memory_space<vmem>>, vector<1x1xf32>
    %120 = vector.broadcast %119 : vector<1x1xf32> to vector<16x1xf32>
    %121 = arith.addf %118, %120 : vector<16x1xf32>
    %c0_66 = arith.constant 0 : index
    %c0_67 = arith.constant 0 : index
    %122 = vector.load %arg14[%c0_66, %c0_67] : memref<16x1xf32, #tpu.memory_space<vmem>>, vector<16x1xf32>
    tpu.vector_store %arg14[%c0_66, %c0_67], %121 {strides = array<i32>} : memref<16x1xf32, #tpu.memory_space<vmem>>, vector<16x1xf32>,
    return
  }
}

</mosaic_0001>

<llo_original>
// kernel: stgcn_forward.1
$region0: #{stgcn_forward.1}
  #allocation0 [shape = 'u32[]', space=smem, size = 0x4, offset = 0x4, fixed_abs, tag = 'smem constant byte address 0x4 - core index']
  #allocation1 [shape = 'u32[144,128]{1,0:T(1,128)}', space=vmem, size = 0x12000, scoped, tag = 'internal scratch']
  #allocation2 [shape = 'f32[1,1]{1,0:T(1,128)S(1)}', space=vmem, size = 0x200, scoped, tag = 'scoped memory for stgcn_forward.1']
  %s0 = inlined_call_operand.vmem [shape: f32[5,16,4], index: 0, kind: input, shape index: {}]
  %s1 = inlined_call_operand.vmem [shape: f32[16,16], index: 1, kind: input, shape index: {}]
  %s2 = inlined_call_operand.vmem [shape: f32[12,24], index: 2, kind: input, shape index: {}]
  %s3 = inlined_call_operand.vmem [shape: f32[1,24], index: 3, kind: input, shape index: {}]
  %s4 = inlined_call_operand.vmem [shape: f32[24,8], index: 4, kind: input, shape index: {}]
  %s5 = inlined_call_operand.vmem [shape: f32[1,8], index: 5, kind: input, shape index: {}]
  %s6 = inlined_call_operand.vmem [shape: f32[24,48], index: 6, kind: input, shape index: {}]
  %s7 = inlined_call_operand.vmem [shape: f32[1,48], index: 7, kind: input, shape index: {}]
  %s8 = inlined_call_operand.vmem [shape: f32[16,1], index: 8, kind: input, shape index: {}]
  %s9 = inlined_call_operand.vmem [shape: f32[16,1], index: 9, kind: input, shape index: {}]
  %s10 = inlined_call_operand.vmem [shape: f32[16,10], index: 10, kind: input, shape index: {}]
  %s11 = inlined_call_operand.vmem [shape: f32[1,10], index: 11, kind: input, shape index: {}]
  %s12 = inlined_call_operand.vmem [shape: f32[10,1], index: 12, kind: input, shape index: {}]
  %s13 = inlined_call_operand.<no memory space> [shape: f32[1,1], index: 13, kind: input, shape index: {}]
  %s14 = inlined_call_operand.vmem [shape: f32[16,1], index: 14, kind: output, shape index: {}]
  %s15 = sld [smem:[#allocation0]]
  $region66: #{stgcn_forward.1} parent=0
    _
  %s17 = ssub.s32 1, %s15
  %s18 = scalar_select 0, %s17, %s15
  %v19 = vstv %s13
  %20 = vst [vmem:[#allocation2] sm:$0x1] %v19
  // Predicated region
  $region2: #{stgcn_forward.1} parent=0 // pred_check
    _
  $region3: #{stgcn_forward.1} parent=0 // pred_check_branch
    %22 = sbr.rel (0) target = $region5
  $region4: #{stgcn_forward.1} parent=0 // pred_region
    _
  $region5: #{stgcn_forward.1} parent=0 // pred_fallthru
    _
  // Predicated region
  $region6: #{stgcn_forward.1} parent=0 // pred_check
    _
  $region7: #{stgcn_forward.1} parent=0 // pred_check_branch
    %24 = sbr.rel (0) target = $region9
  $region8: #{stgcn_forward.1} parent=0 // pred_region
    _
  $region9: #{stgcn_forward.1} parent=0 // pred_fallthru
    _
  // Predicated region
  $region10: #{stgcn_forward.1} parent=0 // pred_check
    _
  $region11: #{stgcn_forward.1} parent=0 // pred_check_branch
    %26 = sbr.rel (0) target = $region13
  $region12: #{stgcn_forward.1} parent=0 // pred_region
    _
  $region13: #{stgcn_forward.1} parent=0 // pred_fallthru
    _
  // Predicated region
  $region14: #{stgcn_forward.1} parent=0 // pred_check
    _
  $region15: #{stgcn_forward.1} parent=0 // pred_check_branch
    %28 = sbr.rel (0) target = $region17
  $region16: #{stgcn_forward.1} parent=0 // pred_region
    _
  $region17: #{stgcn_forward.1} parent=0 // pred_fallthru
    _
  // Predicated region
  $region18: #{stgcn_forward.1} parent=0 // pred_check
    _
  $region19: #{stgcn_forward.1} parent=0 // pred_check_branch
    %30 = sbr.rel (0) target = $region21
  $region20: #{stgcn_forward.1} parent=0 // pred_region
    _
  $region21: #{stgcn_forward.1} parent=0 // pred_fallthru
    _
  // Predicated region
  $region22: #{stgcn_forward.1} parent=0 // pred_check
    _
  $region23: #{stgcn_forward.1} parent=0 // pred_check_branch
    %32 = sbr.rel (0) target = $region25
  $region24: #{stgcn_forward.1} parent=0 // pred_region
    _
  $region25: #{stgcn_forward.1} parent=0 // pred_fallthru
    _
  // Predicated region
  $region26: #{stgcn_forward.1} parent=0 // pred_check
    _
  $region27: #{stgcn_forward.1} parent=0 // pred_check_branch
    %34 = sbr.rel (0) target = $region29
  $region28: #{stgcn_forward.1} parent=0 // pred_region
    _
  $region29: #{stgcn_forward.1} parent=0 // pred_fallthru
    _
  // Predicated region
  $region30: #{stgcn_forward.1} parent=0 // pred_check
    _
  $region31: #{stgcn_forward.1} parent=0 // pred_check_branch
    %36 = sbr.rel (0) target = $region33
  $region32: #{stgcn_forward.1} parent=0 // pred_region
    _
  $region33: #{stgcn_forward.1} parent=0 // pred_fallthru
    _
  // Predicated region
  $region34: #{stgcn_forward.1} parent=0 // pred_check
    _
  $region35: #{stgcn_forward.1} parent=0 // pred_check_branch
    %38 = sbr.rel (0) target = $region37
  $region36: #{stgcn_forward.1} parent=0 // pred_region
    _
  $region37: #{stgcn_forward.1} parent=0 // pred_fallthru
    _
  // Predicated region
  $region38: #{stgcn_forward.1} parent=0 // pred_check
    _
  $region39: #{stgcn_forward.1} parent=0 // pred_check_branch
    %40 = sbr.rel (0) target = $region41
  $region40: #{stgcn_forward.1} parent=0 // pred_region
    _
  $region41: #{stgcn_forward.1} parent=0 // pred_fallthru
    _
  // Predicated region
  $region42: #{stgcn_forward.1} parent=0 // pred_check
    _
  $region43: #{stgcn_forward.1} parent=0 // pred_check_branch
    %42 = sbr.rel (0) target = $region45
  $region44: #{stgcn_forward.1} parent=0 // pred_region
    _
  $region45: #{stgcn_forward.1} parent=0 // pred_fallthru
    _
  // Predicated region
  $region46: #{stgcn_forward.1} parent=0 // pred_check
    _
  $region47: #{stgcn_forward.1} parent=0 // pred_check_branch
    %44 = sbr.rel (0) target = $region49
  $region48: #{stgcn_forward.1} parent=0 // pred_region
    _
  $region49: #{stgcn_forward.1} parent=0 // pred_fallthru
    _
  // Predicated region
  $region50: #{stgcn_forward.1} parent=0 // pred_check
    _
  $region51: #{stgcn_forward.1} parent=0 // pred_check_branch
    %46 = sbr.rel (0) target = $region53
  $region52: #{stgcn_forward.1} parent=0 // pred_region
    _
  $region53: #{stgcn_forward.1} parent=0 // pred_fallthru
    _
  // Predicated region
  $region54: #{stgcn_forward.1} parent=0 // pred_check
    _
  $region55: #{stgcn_forward.1} parent=0 // pred_check_branch
    %48 = sbr.rel (0) target = $region57
  $region56: #{stgcn_forward.1} parent=0 // pred_region
    _
  $region57: #{stgcn_forward.1} parent=0 // pred_fallthru
    _
  %v49 = vld [vmem:[%s0] sm:$0xff]
  %v50 = vld [vmem:[%s0 + $0x8] sm:$0xff]
  %s51 = scalar_lea.vmem %s0, 16
  %v52 = vld [vmem:[%s51] sm:$0xff]
  %v53 = vld [vmem:[%s51 + $0x8] sm:$0xff]
  %s54 = scalar_lea.vmem %s0, 32
  %v55 = vld [vmem:[%s54] sm:$0xff]
  %v56 = vld [vmem:[%s54 + $0x8] sm:$0xff]
  %59 = vrot.lane.b32.xlu0 %v52, 4
  %v60 = vpop.permute.xlu0 %59
  %61 = vrot.lane.b32.xlu0 %v53, 4
  %v62 = vpop.permute.xlu0 %61
  %67 = vrot.lane.b32.xlu0 %v55, 8
  %v68 = vpop.permute.xlu0 %67
  %69 = vrot.lane.b32.xlu0 %v56, 8
  %v70 = vpop.permute.xlu0 %69
  %vm73 = vcmask 31744
  %v74 = vsel %vm73, %v49, %v60
  %v75 = vsel %vm73, %v50, %v62
  %vm76 = vcmask 64512
  %v77 = vsel %vm76, %v74, %v68
  %v78 = vsel %vm76, %v75, %v70
  %s79 = scalar_lea.vmem %s0, 48
  %v80 = vld [vmem:[%s79] sm:$0xff]
  %v81 = vld [vmem:[%s79 + $0x8] sm:$0xff]
  %82 = vrot.lane.b32.xlu0 %v55, 4
  %v83 = vpop.permute.xlu0 %82
  %84 = vrot.lane.b32.xlu0 %v56, 4
  %v85 = vpop.permute.xlu0 %84
  %90 = vrot.lane.b32.xlu0 %v80, 8
  %v91 = vpop.permute.xlu0 %90
  %92 = vrot.lane.b32.xlu0 %v81, 8
  %v93 = vpop.permute.xlu0 %92
  %v96 = vsel %vm73, %v52, %v83
  %v97 = vsel %vm73, %v53, %v85
  %v98 = vsel %vm76, %v96, %v91
  %v99 = vsel %vm76, %v97, %v93
  %s100 = scalar_lea.vmem %s0, 64
  %v101 = vld [vmem:[%s100] sm:$0xff]
  %v102 = vld [vmem:[%s100 + $0x8] sm:$0xff]
  %103 = vrot.lane.b32.xlu0 %v80, 4
  %v104 = vpop.permute.xlu0 %103
  %105 = vrot.lane.b32.xlu0 %v81, 4
  %v106 = vpop.permute.xlu0 %105
  %111 = vrot.lane.b32.xlu0 %v101, 8
  %v112 = vpop.permute.xlu0 %111
  %113 = vrot.lane.b32.xlu0 %v102, 8
  %v114 = vpop.permute.xlu0 %113
  %v117 = vsel %vm73, %v55, %v104
  %v118 = vsel %vm73, %v56, %v106
  %v119 = vsel %vm76, %v117, %v112
  %v120 = vsel %vm76, %v118, %v114
  %v121 = vld [vmem:[%s2] sm:$0xff]
  %v122 = vld [vmem:[%s2 + $0x8] sm:$0xf]
  %v123 = vld [vmem:[%s3] sm:$0x1]
  %v125 = vlaneseq
  %v126 = vshrl.u32 %v125, 7
  %v127 = vsub.s32 0, %v126
  %v128 = vrot.slane %v123, %v127
  %vm130 = vcmask 97280
  %v132 = vsel %vm130, %v77, 0
  %v135 = vsel %vm130, %v78, 0
  %v138 = vsel %vm130, %v98, 0
  %v141 = vsel %vm130, %v99, 0
  %v144 = vsel %vm130, %v119, 0
  %v147 = vsel %vm130, %v120, 0
  %vm149 = vcmask 1043456
  %v151 = vsel %vm149, %v122, 0
  %153 = vmatprep.subr.mxu0 0.0
  %154 = vmatpush1.msra.mxu0 0.0
  %155 = vmatprep.subr.mxu0 0.0
  %156 = vmatpush1.msra.mxu0 0.0
  %157 = vmatprep.subr.mxu0 0.0
  %158 = vmatpush1.msra.mxu0 0.0
  %159 = vmatprep.subr.mxu0 0.0
  %160 = vmatpush1.msra.mxu0 0.0
  %161 = vmatprep.subr.mxu0 0.0
  %162 = vmatpush1.msra.mxu0 0.0
  %163 = vmatprep.subr.mxu0 0.0
  %164 = vmatpush1.msra.mxu0 0.0
  %165 = vmatprep.subr.mxu0 0.0
  %166 = vmatpush1.msra.mxu0 0.0
  %167 = vmatprep.subr.mxu0 0.0
  %168 = vmatpush1.msra.mxu0 0.0
  %169 = vmatprep.subr.mxu0 0.0
  %170 = vmatpush1.msra.mxu0 0.0
  %171 = vmatprep.subr.mxu0 0.0
  %172 = vmatpush1.msra.mxu0 0.0
  %173 = vmatprep.subr.mxu0 0.0
  %174 = vmatpush1.msra.mxu0 0.0
  %175 = vmatprep.subr.mxu0 0.0
  %176 = vmatpush1.msra.mxu0 0.0
  %177 = vmatprep.subr.mxu0 0.0
  %178 = vmatpush1.msra.mxu0 0.0
  %179 = vmatprep.subr.mxu0 0.0
  %180 = vmatpush1.msra.mxu0 0.0
  %181 = vmatprep.subr.mxu0 0.0
  %182 = vmatpush1.msra.mxu0 %v151
  %183 = vmatprep.subr.mxu0 0.0
  %184 = vmatpush1.msra.mxu0 %v121
  %185 = vmatprep.subr.mxu0 0.0
  %186 = vmatpush2.msra.mxu0 0.0
  %187 = vmatprep.subr.mxu0 0.0
  %188 = vmatpush2.msra.mxu0 0.0
  %189 = vmatprep.subr.mxu0 0.0
  %190 = vmatpush2.msra.mxu0 0.0
  %191 = vmatprep.subr.mxu0 0.0
  %192 = vmatpush2.msra.mxu0 0.0
  %193 = vmatprep.subr.mxu0 0.0
  %194 = vmatpush2.msra.mxu0 0.0
  %195 = vmatprep.subr.mxu0 0.0
  %196 = vmatpush2.msra.mxu0 0.0
  %197 = vmatprep.subr.mxu0 0.0
  %198 = vmatpush2.msra.mxu0 0.0
  %199 = vmatprep.subr.mxu0 0.0
  %200 = vmatpush2.msra.mxu0 0.0
  %201 = vmatprep.subr.mxu0 0.0
  %202 = vmatpush2.msra.mxu0 0.0
  %203 = vmatprep.subr.mxu0 0.0
  %204 = vmatpush2.msra.mxu0 0.0
  %205 = vmatprep.subr.mxu0 0.0
  %206 = vmatpush2.msra.mxu0 0.0
  %207 = vmatprep.subr.mxu0 0.0
  %208 = vmatpush2.msra.mxu0 0.0
  %209 = vmatprep.subr.mxu0 0.0
  %210 = vmatpush2.msra.mxu0 0.0
  %211 = vmatprep.subr.mxu0 0.0
  %212 = vmatpush2.msra.mxu0 0.0
  %213 = vmatprep.subr.mxu0 0.0
  %214 = vmatpush2.msra.mxu0 0.0
  %215 = vmatprep.subr.mxu0 0.0
  %216 = vmatpush2.msra.mxu0 0.0
  %217 = vmatprep.mubr.f32.mxu0 0.0
  %218 = vmatmul.mubr.f32.gmra.mxu0 %v132
  %v219 = vpop.f32.mrf.mxu0
  %v220 = vadd.f32 %v128, %v219
  %v221 = vpop.f32.mrf.mxu0
  %222 = vmatprep.mubr.f32.mxu0 0.0
  %223 = vmatmul.mubr.f32.gmra.mxu0 %v135
  %v224 = vpop.f32.mrf.mxu0
  %v225 = vadd.f32 %v128, %v224
  %v226 = vpop.f32.mrf.mxu0
  %227 = vmatprep.mubr.f32.mxu0 0.0
  %228 = vmatmul.mubr.f32.gmra.mxu0 %v138
  %v229 = vpop.f32.mrf.mxu0
  %v230 = vadd.f32 %v128, %v229
  %v231 = vpop.f32.mrf.mxu0
  %232 = vmatprep.mubr.f32.mxu0 0.0
  %233 = vmatmul.mubr.f32.gmra.mxu0 %v141
  %v234 = vpop.f32.mrf.mxu0
  %v235 = vadd.f32 %v128, %v234
  %v236 = vpop.f32.mrf.mxu0
  %237 = vmatprep.mubr.f32.mxu0 0.0
  %238 = vmatmul.mubr.f32.gmra.mxu0 %v144
  %v239 = vpop.f32.mrf.mxu0
  %v240 = vadd.f32 %v128, %v239
  %v241 = vpop.f32.mrf.mxu0
  %242 = vmatprep.mubr.f32.mxu0 0.0
  %243 = vmatmul.mubr.f32.gmra.mxu0 %v147
  %v244 = vpop.f32.mrf.mxu0
  %v245 = vadd.f32 %v128, %v244
  %v246 = vpop.f32.mrf.mxu0
  %247 = vdwg.mxu0
  %v248 = vxor.u32 %v220, 2147483648
  %v249 = vxor.u32 %v225, 2147483648
  %v250 = vxor.u32 %v230, 2147483648
  %v251 = vxor.u32 %v235, 2147483648
  %v252 = vxor.u32 %v240, 2147483648
  %v253 = vxor.u32 %v245, 2147483648
  %v254 = vmul.f32 %v248, 1.442695
  %v255 = vpow.pop %v254
  %v256 = vmul.f32 %v249, 1.442695
  %v257 = vpow.pop %v256
  %v258 = vmul.f32 %v250, 1.442695
  %v259 = vpow.pop %v258
  %v260 = vmul.f32 %v251, 1.442695
  %v261 = vpow.pop %v260
  %v262 = vmul.f32 %v252, 1.442695
  %v263 = vpow.pop %v262
  %v264 = vmul.f32 %v253, 1.442695
  %v265 = vpow.pop %v264
  %v266 = vadd.f32 %v255, 1.0
  %v267 = vadd.f32 %v257, 1.0
  %v268 = vadd.f32 %v259, 1.0
  %v269 = vadd.f32 %v261, 1.0
  %v270 = vadd.f32 %v263, 1.0
  %v271 = vadd.f32 %v265, 1.0
  %v272 = vrcp.pop %v266
  %v273 = vmul.f32 1.0, %v272
  %v274 = vrcp.pop %v267
  %v275 = vmul.f32 1.0, %v274
  %v276 = vrcp.pop %v268
  %v277 = vmul.f32 1.0, %v276
  %v278 = vrcp.pop %v269
  %v279 = vmul.f32 1.0, %v278
  %v280 = vrcp.pop %v270
  %v281 = vmul.f32 1.0, %v280
  %v282 = vrcp.pop %v271
  %v283 = vmul.f32 1.0, %v282
  %290 = vrot.lane.b32.xlu0 %v273, 120
  %v291 = vpop.permute.xlu0 %290
  %292 = vrot.lane.b32.xlu0 %v275, 120
  %v293 = vpop.permute.xlu0 %292
  %294 = vrot.lane.b32.xlu0 %v277, 120
  %v295 = vpop.permute.xlu0 %294
  %296 = vrot.lane.b32.xlu0 %v279, 120
  %v297 = vpop.permute.xlu0 %296
  %298 = vrot.lane.b32.xlu0 %v281, 120
  %v299 = vpop.permute.xlu0 %298
  %300 = vrot.lane.b32.xlu0 %v283, 120
  %v301 = vpop.permute.xlu0 %300
  %v308 = vmul.f32 %v220, %v291
  %v309 = vmul.f32 %v225, %v293
  %v310 = vmul.f32 %v230, %v295
  %v311 = vmul.f32 %v235, %v297
  %v312 = vmul.f32 %v240, %v299
  %v313 = vmul.f32 %v245, %v301
  %320 = vrot.lane.b32.xlu0 %v220, 112
  %v321 = vpop.permute.xlu0 %320
  %322 = vrot.lane.b32.xlu0 %v225, 112
  %v323 = vpop.permute.xlu0 %322
  %324 = vrot.lane.b32.xlu0 %v230, 112
  %v325 = vpop.permute.xlu0 %324
  %326 = vrot.lane.b32.xlu0 %v235, 112
  %v327 = vpop.permute.xlu0 %326
  %328 = vrot.lane.b32.xlu0 %v240, 112
  %v329 = vpop.permute.xlu0 %328
  %330 = vrot.lane.b32.xlu0 %v245, 112
  %v331 = vpop.permute.xlu0 %330
  %v338 = vadd.f32 %v308, %v321
  %v339 = vadd.f32 %v309, %v323
  %v340 = vadd.f32 %v310, %v325
  %v341 = vadd.f32 %v311, %v327
  %v342 = vadd.f32 %v312, %v329
  %v343 = vadd.f32 %v313, %v331
  %v344 = vmax.f32 %v338, 0.0
  %v345 = vmax.f32 %v339, 0.0
  %v346 = vmax.f32 %v340, 0.0
  %v347 = vmax.f32 %v341, 0.0
  %v348 = vmax.f32 %v342, 0.0
  %v349 = vmax.f32 %v343, 0.0
  %v350 = vld [vmem:[%s1] sm:$0xff]
  %v351 = vld [vmem:[%s1 + $0x8] sm:$0xff]
  %354 = vrot.lane.b32.xlu0 %v346, 8
  %v355 = vpop.permute.xlu0 %354
  %356 = vrot.lane.b32.xlu0 %v347, 8
  %v357 = vpop.permute.xlu0 %356
  %362 = vrot.lane.b32.xlu0 %v348, 16
  %v363 = vpop.permute.xlu0 %362
  %364 = vrot.lane.b32.xlu0 %v349, 16
  %v365 = vpop.permute.xlu0 %364
  %v368 = vsel %vm76, %v344, %v355
  %v369 = vsel %vm76, %v345, %v357
  %vm370 = vcmask 130048
  %v371 = vsel %vm370, %v368, %v363
  %v372 = vsel %vm370, %v369, %v365
  %v374 = vsel %vm370, %v350, 0
  %v377 = vsel %vm370, %v351, 0
  %379 = vmatprep.subr.mxu0 0.0
  %380 = vmatpush1.msra.mxu0 0.0
  %381 = vmatprep.subr.mxu0 0.0
  %382 = vmatpush1.msra.mxu0 0.0
  %383 = vmatprep.subr.mxu0 0.0
  %384 = vmatpush1.msra.mxu0 0.0
  %385 = vmatprep.subr.mxu0 0.0
  %386 = vmatpush1.msra.mxu0 0.0
  %387 = vmatprep.subr.mxu0 0.0
  %388 = vmatpush1.msra.mxu0 0.0
  %389 = vmatprep.subr.mxu0 0.0
  %390 = vmatpush1.msra.mxu0 0.0
  %391 = vmatprep.subr.mxu0 0.0
  %392 = vmatpush1.msra.mxu0 0.0
  %393 = vmatprep.subr.mxu0 0.0
  %394 = vmatpush1.msra.mxu0 0.0
  %395 = vmatprep.subr.mxu0 0.0
  %396 = vmatpush1.msra.mxu0 0.0
  %397 = vmatprep.subr.mxu0 0.0
  %398 = vmatpush1.msra.mxu0 0.0
  %399 = vmatprep.subr.mxu0 0.0
  %400 = vmatpush1.msra.mxu0 0.0
  %401 = vmatprep.subr.mxu0 0.0
  %402 = vmatpush1.msra.mxu0 0.0
  %403 = vmatprep.subr.mxu0 0.0
  %404 = vmatpush1.msra.mxu0 0.0
  %405 = vmatprep.subr.mxu0 0.0
  %406 = vmatpush1.msra.mxu0 0.0
  %407 = vmatprep.subr.mxu0 0.0
  %408 = vmatpush1.msra.mxu0 %v372
  %409 = vmatprep.subr.mxu0 0.0
  %410 = vmatpush1.msra.mxu0 %v371
  %411 = vmatprep.subr.mxu0 0.0
  %412 = vmatpush2.msra.mxu0 0.0
  %413 = vmatprep.subr.mxu0 0.0
  %414 = vmatpush2.msra.mxu0 0.0
  %415 = vmatprep.subr.mxu0 0.0
  %416 = vmatpush2.msra.mxu0 0.0
  %417 = vmatprep.subr.mxu0 0.0
  %418 = vmatpush2.msra.mxu0 0.0
  %419 = vmatprep.subr.mxu0 0.0
  %420 = vmatpush2.msra.mxu0 0.0
  %421 = vmatprep.subr.mxu0 0.0
  %422 = vmatpush2.msra.mxu0 0.0
  %423 = vmatprep.subr.mxu0 0.0
  %424 = vmatpush2.msra.mxu0 0.0
  %425 = vmatprep.subr.mxu0 0.0
  %426 = vmatpush2.msra.mxu0 0.0
  %427 = vmatprep.subr.mxu0 0.0
  %428 = vmatpush2.msra.mxu0 0.0
  %429 = vmatprep.subr.mxu0 0.0
  %430 = vmatpush2.msra.mxu0 0.0
  %431 = vmatprep.subr.mxu0 0.0
  %432 = vmatpush2.msra.mxu0 0.0
  %433 = vmatprep.subr.mxu0 0.0
  %434 = vmatpush2.msra.mxu0 0.0
  %435 = vmatprep.subr.mxu0 0.0
  %436 = vmatpush2.msra.mxu0 0.0
  %437 = vmatprep.subr.mxu0 0.0
  %438 = vmatpush2.msra.mxu0 0.0
  %439 = vmatprep.subr.mxu0 0.0
  %440 = vmatpush2.msra.mxu0 0.0
  %441 = vmatprep.subr.mxu0 0.0
  %442 = vmatpush2.msra.mxu0 0.0
  %443 = vmatprep.mubr.f32.mxu0 0.0
  %444 = vmatmul.mubr.f32.gmra.mxu0 %v374
  %v445 = vpop.f32.mrf.mxu0
  %v446 = vadd.f32 0.0, %v445
  %v447 = vpop.f32.mrf.mxu0
  %448 = vmatprep.mubr.f32.mxu0 0.0
  %449 = vmatmul.mubr.f32.gmra.mxu0 %v377
  %v450 = vpop.f32.mrf.mxu0
  %v451 = vadd.f32 0.0, %v450
  %v452 = vpop.f32.mrf.mxu0
  %453 = vdwg.mxu0
  %454 = vmatprep.subr.mxu0 0.0
  %455 = vmatpush1.msra.mxu0 0.0
  %456 = vmatprep.subr.mxu0 0.0
  %457 = vmatpush1.msra.mxu0 0.0
  %458 = vmatprep.subr.mxu0 0.0
  %459 = vmatpush1.msra.mxu0 0.0
  %460 = vmatprep.subr.mxu0 0.0
  %461 = vmatpush1.msra.mxu0 0.0
  %462 = vmatprep.subr.mxu0 0.0
  %463 = vmatpush1.msra.mxu0 0.0
  %464 = vmatprep.subr.mxu0 0.0
  %465 = vmatpush1.msra.mxu0 0.0
  %466 = vmatprep.subr.mxu0 0.0
  %467 = vmatpush1.msra.mxu0 0.0
  %468 = vmatprep.subr.mxu0 0.0
  %469 = vmatpush1.msra.mxu0 0.0
  %470 = vmatprep.subr.mxu0 0.0
  %471 = vmatpush1.msra.mxu0 0.0
  %472 = vmatprep.subr.mxu0 0.0
  %473 = vmatpush1.msra.mxu0 0.0
  %474 = vmatprep.subr.mxu0 0.0
  %475 = vmatpush1.msra.mxu0 0.0
  %476 = vmatprep.subr.mxu0 0.0
  %477 = vmatpush1.msra.mxu0 0.0
  %478 = vmatprep.subr.mxu0 0.0
  %479 = vmatpush1.msra.mxu0 0.0
  %480 = vmatprep.subr.mxu0 0.0
  %481 = vmatpush1.msra.mxu0 0.0
  %482 = vmatprep.subr.mxu0 0.0
  %483 = vmatpush1.msra.mxu0 %v451
  %484 = vmatprep.subr.mxu0 0.0
  %485 = vmatpush1.msra.mxu0 %v446
  %486 = vmatprep.subr.mxu0 0.0
  %487 = vmatpush2.msra.mxu0 0.0
  %488 = vmatprep.subr.mxu0 0.0
  %489 = vmatpush2.msra.mxu0 0.0
  %490 = vmatprep.subr.mxu0 0.0
  %491 = vmatpush2.msra.mxu0 0.0
  %492 = vmatprep.subr.mxu0 0.0
  %493 = vmatpush2.msra.mxu0 0.0
  %494 = vmatprep.subr.mxu0 0.0
  %495 = vmatpush2.msra.mxu0 0.0
  %496 = vmatprep.subr.mxu0 0.0
  %497 = vmatpush2.msra.mxu0 0.0
  %498 = vmatprep.subr.mxu0 0.0
  %499 = vmatpush2.msra.mxu0 0.0
  %500 = vmatprep.subr.mxu0 0.0
  %501 = vmatpush2.msra.mxu0 0.0
  %502 = vmatprep.subr.mxu0 0.0
  %503 = vmatpush2.msra.mxu0 0.0
  %504 = vmatprep.subr.mxu0 0.0
  %505 = vmatpush2.msra.mxu0 0.0
  %506 = vmatprep.subr.mxu0 0.0
  %507 = vmatpush2.msra.mxu0 0.0
  %508 = vmatprep.subr.mxu0 0.0
  %509 = vmatpush2.msra.mxu0 0.0
  %510 = vmatprep.subr.mxu0 0.0
  %511 = vmatpush2.msra.mxu0 0.0
  %512 = vmatprep.subr.mxu0 0.0
  %513 = vmatpush2.msra.mxu0 0.0
  %514 = vmatprep.subr.mxu0 0.0
  %515 = vmatpush2.msra.mxu0 0.0
  %516 = vmatprep.subr.mxu0 0.0
  %517 = vmatpush2.msra.mxu0 0.0
  %518 = vmatprep.mubr.f32.mxu0 0.0
  %519 = vmatmul.mubr.f32.gmra.mxu0 %v374
  %v520 = vpop.f32.mrf.mxu0
  %v521 = vadd.f32 0.0, %v520
  %v522 = vpop.f32.mrf.mxu0
  %523 = vmatprep.mubr.f32.mxu0 0.0
  %524 = vmatmul.mubr.f32.gmra.mxu0 %v377
  %v525 = vpop.f32.mrf.mxu0
  %v526 = vadd.f32 0.0, %v525
  %v527 = vpop.f32.mrf.mxu0
  %528 = vdwg.mxu0
  %v529 = vmul.f32 %v521, 2.0
  %v530 = vmul.f32 %v526, 2.0
  %v531 = vsub.f32 %v529, %v371
  %v532 = vsub.f32 %v530, %v372
  %535 = vrot.lane.b32.xlu0 %v446, 8
  %v536 = vpop.permute.xlu0 %535
  %537 = vrot.lane.b32.xlu0 %v451, 8
  %v538 = vpop.permute.xlu0 %537
  %543 = vrot.lane.b32.xlu0 %v531, 16
  %v544 = vpop.permute.xlu0 %543
  %545 = vrot.lane.b32.xlu0 %v532, 16
  %v546 = vpop.permute.xlu0 %545
  %v549 = vsel %vm76, %v371, %v536
  %v550 = vsel %vm76, %v372, %v538
  %v551 = vsel %vm370, %v549, %v544
  %v552 = vsel %vm370, %v550, %v546
  %555 = vrot.lane.b32.xlu0 %v371, 120
  %v556 = vpop.permute.xlu0 %555
  %557 = vrot.lane.b32.xlu0 %v372, 120
  %v558 = vpop.permute.xlu0 %557
  %561 = vrot.lane.b32.xlu0 %v531, 8
  %v562 = vpop.permute.xlu0 %561
  %563 = vrot.lane.b32.xlu0 %v532, 8
  %v564 = vpop.permute.xlu0 %563
  %v567 = vsel %vm76, %v556, %v446
  %v568 = vsel %vm76, %v558, %v451
  %v569 = vsel %vm370, %v567, %v562
  %v570 = vsel %vm370, %v568, %v564
  %571 = vrot.lane.b32.xlu0 %v371, 112
  %v572 = vpop.permute.xlu0 %571
  %573 = vrot.lane.b32.xlu0 %v372, 112
  %v574 = vpop.permute.xlu0 %573
  %577 = vrot.lane.b32.xlu0 %v446, 120
  %v578 = vpop.permute.xlu0 %577
  %579 = vrot.lane.b32.xlu0 %v451, 120
  %v580 = vpop.permute.xlu0 %579
  %v583 = vsel %vm76, %v572, %v578
  %v584 = vsel %vm76, %v574, %v580
  %v585 = vsel %vm370, %v583, %v531
  %v586 = vsel %vm370, %v584, %v532
  %v587 = vld [vmem:[%s4] sm:$0xff]
  %v588 = vld [vmem:[%s4 + $0x8] sm:$0xff]
  %v589 = vld [vmem:[%s4 + $0x10] sm:$0xff]
  %v590 = vld [vmem:[%s5] sm:$0x1]
  %v592 = vlaneseq
  %v593 = vshrl.u32 %v592, 7
  %v594 = vsub.s32 0, %v593
  %v595 = vrot.slane %v590, %v594
  %vm597 = vcmask 195584
  %v599 = vsel %vm597, %v551, 0
  %v602 = vsel %vm597, %v552, 0
  %v605 = vsel %vm597, %v569, 0
  %v608 = vsel %vm597, %v570, 0
  %v611 = vsel %vm597, %v585, 0
  %v614 = vsel %vm597, %v586, 0
  %616 = vmatprep.subr.mxu0 0.0
  %617 = vmatpush1.msra.mxu0 0.0
  %618 = vmatprep.subr.mxu0 0.0
  %619 = vmatpush1.msra.mxu0 0.0
  %620 = vmatprep.subr.mxu0 0.0
  %621 = vmatpush1.msra.mxu0 0.0
  %622 = vmatprep.subr.mxu0 0.0
  %623 = vmatpush1.msra.mxu0 0.0
  %624 = vmatprep.subr.mxu0 0.0
  %625 = vmatpush1.msra.mxu0 0.0
  %626 = vmatprep.subr.mxu0 0.0
  %627 = vmatpush1.msra.mxu0 0.0
  %628 = vmatprep.subr.mxu0 0.0
  %629 = vmatpush1.msra.mxu0 0.0
  %630 = vmatprep.subr.mxu0 0.0
  %631 = vmatpush1.msra.mxu0 0.0
  %632 = vmatprep.subr.mxu0 0.0
  %633 = vmatpush1.msra.mxu0 0.0
  %634 = vmatprep.subr.mxu0 0.0
  %635 = vmatpush1.msra.mxu0 0.0
  %636 = vmatprep.subr.mxu0 0.0
  %637 = vmatpush1.msra.mxu0 0.0
  %638 = vmatprep.subr.mxu0 0.0
  %639 = vmatpush1.msra.mxu0 0.0
  %640 = vmatprep.subr.mxu0 0.0
  %641 = vmatpush1.msra.mxu0 0.0
  %642 = vmatprep.subr.mxu0 0.0
  %643 = vmatpush1.msra.mxu0 %v589
  %644 = vmatprep.subr.mxu0 0.0
  %645 = vmatpush1.msra.mxu0 %v588
  %646 = vmatprep.subr.mxu0 0.0
  %647 = vmatpush1.msra.mxu0 %v587
  %648 = vmatprep.subr.mxu0 0.0
  %649 = vmatpush2.msra.mxu0 0.0
  %650 = vmatprep.subr.mxu0 0.0
  %651 = vmatpush2.msra.mxu0 0.0
  %652 = vmatprep.subr.mxu0 0.0
  %653 = vmatpush2.msra.mxu0 0.0
  %654 = vmatprep.subr.mxu0 0.0
  %655 = vmatpush2.msra.mxu0 0.0
  %656 = vmatprep.subr.mxu0 0.0
  %657 = vmatpush2.msra.mxu0 0.0
  %658 = vmatprep.subr.mxu0 0.0
  %659 = vmatpush2.msra.mxu0 0.0
  %660 = vmatprep.subr.mxu0 0.0
  %661 = vmatpush2.msra.mxu0 0.0
  %662 = vmatprep.subr.mxu0 0.0
  %663 = vmatpush2.msra.mxu0 0.0
  %664 = vmatprep.subr.mxu0 0.0
  %665 = vmatpush2.msra.mxu0 0.0
  %666 = vmatprep.subr.mxu0 0.0
  %667 = vmatpush2.msra.mxu0 0.0
  %668 = vmatprep.subr.mxu0 0.0
  %669 = vmatpush2.msra.mxu0 0.0
  %670 = vmatprep.subr.mxu0 0.0
  %671 = vmatpush2.msra.mxu0 0.0
  %672 = vmatprep.subr.mxu0 0.0
  %673 = vmatpush2.msra.mxu0 0.0
  %674 = vmatprep.subr.mxu0 0.0
  %675 = vmatpush2.msra.mxu0 0.0
  %676 = vmatprep.subr.mxu0 0.0
  %677 = vmatpush2.msra.mxu0 0.0
  %678 = vmatprep.subr.mxu0 0.0
  %679 = vmatpush2.msra.mxu0 0.0
  %680 = vmatprep.mubr.f32.mxu0 0.0
  %681 = vmatmul.mubr.f32.gmra.mxu0 %v599
  %v682 = vpop.f32.mrf.mxu0
  %v683 = vadd.f32 %v595, %v682
  %v684 = vpop.f32.mrf.mxu0
  %685 = vmatprep.mubr.f32.mxu0 0.0
  %686 = vmatmul.mubr.f32.gmra.mxu0 %v602
  %v687 = vpop.f32.mrf.mxu0
  %v688 = vadd.f32 %v595, %v687
  %v689 = vpop.f32.mrf.mxu0
  %690 = vmatprep.mubr.f32.mxu0 0.0
  %691 = vmatmul.mubr.f32.gmra.mxu0 %v605
  %v692 = vpop.f32.mrf.mxu0
  %v693 = vadd.f32 %v595, %v692
  %v694 = vpop.f32.mrf.mxu0
  %695 = vmatprep.mubr.f32.mxu0 0.0
  %696 = vmatmul.mubr.f32.gmra.mxu0 %v608
  %v697 = vpop.f32.mrf.mxu0
  %v698 = vadd.f32 %v595, %v697
  %v699 = vpop.f32.mrf.mxu0
  %700 = vmatprep.mubr.f32.mxu0 0.0
  %701 = vmatmul.mubr.f32.gmra.mxu0 %v611
  %v702 = vpop.f32.mrf.mxu0
  %v703 = vadd.f32 %v595, %v702
  %v704 = vpop.f32.mrf.mxu0
  %705 = vmatprep.mubr.f32.mxu0 0.0
  %706 = vmatmul.mubr.f32.gmra.mxu0 %v614
  %v707 = vpop.f32.mrf.mxu0
  %v708 = vadd.f32 %v595, %v707
  %v709 = vpop.f32.mrf.mxu0
  %710 = vdwg.mxu0
  %v711 = vmax.f32 %v683, 0.0
  %v712 = vmax.f32 %v688, 0.0
  %v713 = vmax.f32 %v693, 0.0
  %v714 = vmax.f32 %v698, 0.0
  %v715 = vmax.f32 %v703, 0.0
  %v716 = vmax.f32 %v708, 0.0
  %719 = vrot.lane.b32.xlu0 %v713, 8
  %v720 = vpop.permute.xlu0 %719
  %721 = vrot.lane.b32.xlu0 %v714, 8
  %v722 = vpop.permute.xlu0 %721
  %727 = vrot.lane.b32.xlu0 %v715, 16
  %v728 = vpop.permute.xlu0 %727
  %729 = vrot.lane.b32.xlu0 %v716, 16
  %v730 = vpop.permute.xlu0 %729
  %v733 = vsel %vm76, %v711, %v720
  %v734 = vsel %vm76, %v712, %v722
  %v735 = vsel %vm370, %v733, %v728
  %v736 = vsel %vm370, %v734, %v730
  %v737 = vld [vmem:[%s6] sm:$0xff]
  %v738 = vld [vmem:[%s6 + $0x8] sm:$0xff]
  %v739 = vld [vmem:[%s6 + $0x10] sm:$0xff]
  %v740 = vld [vmem:[%s7] sm:$0x1]
  %v742 = vlaneseq
  %v743 = vshrl.u32 %v742, 7
  %v744 = vsub.s32 0, %v743
  %v745 = vrot.slane %v740, %v744
  %v748 = vsel %vm597, %v735, 0
  %v751 = vsel %vm597, %v736, 0
  %753 = vmatprep.subr.mxu0 0.0
  %754 = vmatpush1.msra.mxu0 0.0
  %755 = vmatprep.subr.mxu0 0.0
  %756 = vmatpush1.msra.mxu0 0.0
  %757 = vmatprep.subr.mxu0 0.0
  %758 = vmatpush1.msra.mxu0 0.0
  %759 = vmatprep.subr.mxu0 0.0
  %760 = vmatpush1.msra.mxu0 0.0
  %761 = vmatprep.subr.mxu0 0.0
  %762 = vmatpush1.msra.mxu0 0.0
  %763 = vmatprep.subr.mxu0 0.0
  %764 = vmatpush1.msra.mxu0 0.0
  %765 = vmatprep.subr.mxu0 0.0
  %766 = vmatpush1.msra.mxu0 0.0
  %767 = vmatprep.subr.mxu0 0.0
  %768 = vmatpush1.msra.mxu0 0.0
  %769 = vmatprep.subr.mxu0 0.0
  %770 = vmatpush1.msra.mxu0 0.0
  %771 = vmatprep.subr.mxu0 0.0
  %772 = vmatpush1.msra.mxu0 0.0
  %773 = vmatprep.subr.mxu0 0.0
  %774 = vmatpush1.msra.mxu0 0.0
  %775 = vmatprep.subr.mxu0 0.0
  %776 = vmatpush1.msra.mxu0 0.0
  %777 = vmatprep.subr.mxu0 0.0
  %778 = vmatpush1.msra.mxu0 0.0
  %779 = vmatprep.subr.mxu0 0.0
  %780 = vmatpush1.msra.mxu0 %v739
  %781 = vmatprep.subr.mxu0 0.0
  %782 = vmatpush1.msra.mxu0 %v738
  %783 = vmatprep.subr.mxu0 0.0
  %784 = vmatpush1.msra.mxu0 %v737
  %785 = vmatprep.subr.mxu0 0.0
  %786 = vmatpush2.msra.mxu0 0.0
  %787 = vmatprep.subr.mxu0 0.0
  %788 = vmatpush2.msra.mxu0 0.0
  %789 = vmatprep.subr.mxu0 0.0
  %790 = vmatpush2.msra.mxu0 0.0
  %791 = vmatprep.subr.mxu0 0.0
  %792 = vmatpush2.msra.mxu0 0.0
  %793 = vmatprep.subr.mxu0 0.0
  %794 = vmatpush2.msra.mxu0 0.0
  %795 = vmatprep.subr.mxu0 0.0
  %796 = vmatpush2.msra.mxu0 0.0
  %797 = vmatprep.subr.mxu0 0.0
  %798 = vmatpush2.msra.mxu0 0.0
  %799 = vmatprep.subr.mxu0 0.0
  %800 = vmatpush2.msra.mxu0 0.0
  %801 = vmatprep.subr.mxu0 0.0
  %802 = vmatpush2.msra.mxu0 0.0
  %803 = vmatprep.subr.mxu0 0.0
  %804 = vmatpush2.msra.mxu0 0.0
  %805 = vmatprep.subr.mxu0 0.0
  %806 = vmatpush2.msra.mxu0 0.0
  %807 = vmatprep.subr.mxu0 0.0
  %808 = vmatpush2.msra.mxu0 0.0
  %809 = vmatprep.subr.mxu0 0.0
  %810 = vmatpush2.msra.mxu0 0.0
  %811 = vmatprep.subr.mxu0 0.0
  %812 = vmatpush2.msra.mxu0 0.0
  %813 = vmatprep.subr.mxu0 0.0
  %814 = vmatpush2.msra.mxu0 0.0
  %815 = vmatprep.subr.mxu0 0.0
  %816 = vmatpush2.msra.mxu0 0.0
  %817 = vmatprep.mubr.f32.mxu0 0.0
  %818 = vmatmul.mubr.f32.gmra.mxu0 %v748
  %v819 = vpop.f32.mrf.mxu0
  %v820 = vadd.f32 %v745, %v819
  %v821 = vpop.f32.mrf.mxu0
  %822 = vmatprep.mubr.f32.mxu0 0.0
  %823 = vmatmul.mubr.f32.gmra.mxu0 %v751
  %v824 = vpop.f32.mrf.mxu0
  %v825 = vadd.f32 %v745, %v824
  %v826 = vpop.f32.mrf.mxu0
  %827 = vdwg.mxu0
  %v828 = vxor.u32 %v820, 2147483648
  %v829 = vxor.u32 %v825, 2147483648
  %v830 = vmul.f32 %v828, 1.442695
  %v831 = vpow.pop %v830
  %v832 = vmul.f32 %v829, 1.442695
  %v833 = vpow.pop %v832
  %v834 = vadd.f32 %v831, 1.0
  %v835 = vadd.f32 %v833, 1.0
  %v836 = vrcp.pop %v834
  %v837 = vmul.f32 1.0, %v836
  %v838 = vrcp.pop %v835
  %v839 = vmul.f32 1.0, %v838
  %842 = vrot.lane.b32.xlu0 %v837, 112
  %v843 = vpop.permute.xlu0 %842
  %844 = vrot.lane.b32.xlu0 %v839, 112
  %v845 = vpop.permute.xlu0 %844
  %v848 = vmul.f32 %v820, %v843
  %v849 = vmul.f32 %v825, %v845
  %852 = vrot.lane.b32.xlu0 %v820, 96
  %v853 = vpop.permute.xlu0 %852
  %854 = vrot.lane.b32.xlu0 %v825, 96
  %v855 = vpop.permute.xlu0 %854
  %v858 = vadd.f32 %v848, %v853
  %v859 = vadd.f32 %v849, %v855
  %v860 = vmax.f32 %v858, 0.0
  %v861 = vmax.f32 %v859, 0.0
  %v862 = vld [vmem:[%s8] sm:$0xff]
  %v863 = vld [vmem:[%s8 + $0x8] sm:$0xff]
  %865 = vset.pattern.permute.xlu0 0
  %866 = vperm.xlu0 %865, %v862
  %v867 = vpop.permute.xlu0 %866
  %870 = vset.pattern.permute.xlu0 0
  %871 = vperm.xlu0 %870, %v863
  %v872 = vpop.permute.xlu0 %871
  %v874 = vmul.f32 %v860, %v867
  %v875 = vmul.f32 %v861, %v872
  %v876 = vld [vmem:[%s9] sm:$0xff]
  %v877 = vld [vmem:[%s9 + $0x8] sm:$0xff]
  %879 = vset.pattern.permute.xlu0 0
  %880 = vperm.xlu0 %879, %v876
  %v881 = vpop.permute.xlu0 %880
  %884 = vset.pattern.permute.xlu0 0
  %885 = vperm.xlu0 %884, %v877
  %v886 = vpop.permute.xlu0 %885
  %v888 = vadd.f32 %v874, %v881
  %v889 = vadd.f32 %v875, %v886
  %vm890 = vcmp.gt.f32.partialorder %v888, 0.0
  %vm891 = vcmp.gt.f32.partialorder %v889, 0.0
  %v892 = vmin.f32 %v888, 0.0
  %v893 = vmin.f32 %v889, 0.0
  %v894 = vmul.f32 %v892, 1.442695
  %v895 = vpow.pop %v894
  %v896 = vmul.f32 %v893, 1.442695
  %v897 = vpow.pop %v896
  %v898 = vsub.f32 %v895, 1.0
  %v899 = vsub.f32 %v897, 1.0
  %v900 = vsel %vm890, %v888, %v898
  %v901 = vsel %vm891, %v889, %v899
  %v902 = vld [vmem:[%s10] sm:$0xff]
  %v903 = vld [vmem:[%s10 + $0x8] sm:$0xff]
  %v904 = vld [vmem:[%s11] sm:$0x1]
  %v906 = vlaneseq
  %v907 = vshrl.u32 %v906, 7
  %v908 = vsub.s32 0, %v907
  %v909 = vrot.slane %v904, %v908
  %v912 = vsel %vm370, %v900, 0
  %v915 = vsel %vm370, %v901, 0
  %917 = vmatprep.subr.mxu0 0.0
  %918 = vmatpush1.msra.mxu0 0.0
  %919 = vmatprep.subr.mxu0 0.0
  %920 = vmatpush1.msra.mxu0 0.0
  %921 = vmatprep.subr.mxu0 0.0
  %922 = vmatpush1.msra.mxu0 0.0
  %923 = vmatprep.subr.mxu0 0.0
  %924 = vmatpush1.msra.mxu0 0.0
  %925 = vmatprep.subr.mxu0 0.0
  %926 = vmatpush1.msra.mxu0 0.0
  %927 = vmatprep.subr.mxu0 0.0
  %928 = vmatpush1.msra.mxu0 0.0
  %929 = vmatprep.subr.mxu0 0.0
  %930 = vmatpush1.msra.mxu0 0.0
  %931 = vmatprep.subr.mxu0 0.0
  %932 = vmatpush1.msra.mxu0 0.0
  %933 = vmatprep.subr.mxu0 0.0
  %934 = vmatpush1.msra.mxu0 0.0
  %935 = vmatprep.subr.mxu0 0.0
  %936 = vmatpush1.msra.mxu0 0.0
  %937 = vmatprep.subr.mxu0 0.0
  %938 = vmatpush1.msra.mxu0 0.0
  %939 = vmatprep.subr.mxu0 0.0
  %940 = vmatpush1.msra.mxu0 0.0
  %941 = vmatprep.subr.mxu0 0.0
  %942 = vmatpush1.msra.mxu0 0.0
  %943 = vmatprep.subr.mxu0 0.0
  %944 = vmatpush1.msra.mxu0 0.0
  %945 = vmatprep.subr.mxu0 0.0
  %946 = vmatpush1.msra.mxu0 %v903
  %947 = vmatprep.subr.mxu0 0.0
  %948 = vmatpush1.msra.mxu0 %v902
  %949 = vmatprep.subr.mxu0 0.0
  %950 = vmatpush2.msra.mxu0 0.0
  %951 = vmatprep.subr.mxu0 0.0
  %952 = vmatpush2.msra.mxu0 0.0
  %953 = vmatprep.subr.mxu0 0.0
  %954 = vmatpush2.msra.mxu0 0.0
  %955 = vmatprep.subr.mxu0 0.0
  %956 = vmatpush2.msra.mxu0 0.0
  %957 = vmatprep.subr.mxu0 0.0
  %958 = vmatpush2.msra.mxu0 0.0
  %959 = vmatprep.subr.mxu0 0.0
  %960 = vmatpush2.msra.mxu0 0.0
  %961 = vmatprep.subr.mxu0 0.0
  %962 = vmatpush2.msra.mxu0 0.0
  %963 = vmatprep.subr.mxu0 0.0
  %964 = vmatpush2.msra.mxu0 0.0
  %965 = vmatprep.subr.mxu0 0.0
  %966 = vmatpush2.msra.mxu0 0.0
  %967 = vmatprep.subr.mxu0 0.0
  %968 = vmatpush2.msra.mxu0 0.0
  %969 = vmatprep.subr.mxu0 0.0
  %970 = vmatpush2.msra.mxu0 0.0
  %971 = vmatprep.subr.mxu0 0.0
  %972 = vmatpush2.msra.mxu0 0.0
  %973 = vmatprep.subr.mxu0 0.0
  %974 = vmatpush2.msra.mxu0 0.0
  %975 = vmatprep.subr.mxu0 0.0
  %976 = vmatpush2.msra.mxu0 0.0
  %977 = vmatprep.subr.mxu0 0.0
  %978 = vmatpush2.msra.mxu0 0.0
  %979 = vmatprep.subr.mxu0 0.0
  %980 = vmatpush2.msra.mxu0 0.0
  %981 = vmatprep.mubr.f32.mxu0 0.0
  %982 = vmatmul.mubr.f32.gmra.mxu0 %v912
  %v983 = vpop.f32.mrf.mxu0
  %v984 = vadd.f32 %v909, %v983
  %v985 = vpop.f32.mrf.mxu0
  %986 = vmatprep.mubr.f32.mxu0 0.0
  %987 = vmatmul.mubr.f32.gmra.mxu0 %v915
  %v988 = vpop.f32.mrf.mxu0
  %v989 = vadd.f32 %v909, %v988
  %v990 = vpop.f32.mrf.mxu0
  %991 = vdwg.mxu0
  %vm992 = vcmp.gt.f32.partialorder %v984, 0.0
  %vm993 = vcmp.gt.f32.partialorder %v989, 0.0
  %v994 = vmin.f32 %v984, 0.0
  %v995 = vmin.f32 %v989, 0.0
  %v996 = vmul.f32 %v994, 1.442695
  %v997 = vpow.pop %v996
  %v998 = vmul.f32 %v995, 1.442695
  %v999 = vpow.pop %v998
  %v1000 = vsub.f32 %v997, 1.0
  %v1001 = vsub.f32 %v999, 1.0
  %v1002 = vsel %vm992, %v984, %v1000
  %v1003 = vsel %vm993, %v989, %v1001
  %v1004 = vld [vmem:[%s12] sm:$0xff]
  %v1005 = vld [vmem:[%s12 + $0x8] sm:$0x3]
  %v1006 = vld [vmem:[#allocation2] sm:$0x1]
  %v1008 = vlaneseq
  %v1009 = vshrl.u32 %v1008, 7
  %v1010 = vsub.s32 0, %v1009
  %v1011 = vrot.slane %v1006, %v1010
  %vm1013 = vcmask 80896
  %v1015 = vsel %vm1013, %v1002, 0
  %v1018 = vsel %vm1013, %v1003, 0
  %vm1020 = vcmask 1041408
  %v1022 = vsel %vm1020, %v1005, 0
  %1024 = vmatprep.subr.mxu0 0.0
  %1025 = vmatpush1.msra.mxu0 0.0
  %1026 = vmatprep.subr.mxu0 0.0
  %1027 = vmatpush1.msra.mxu0 0.0
  %1028 = vmatprep.subr.mxu0 0.0
  %1029 = vmatpush1.msra.mxu0 0.0
  %1030 = vmatprep.subr.mxu0 0.0
  %1031 = vmatpush1.msra.mxu0 0.0
  %1032 = vmatprep.subr.mxu0 0.0
  %1033 = vmatpush1.msra.mxu0 0.0
  %1034 = vmatprep.subr.mxu0 0.0
  %1035 = vmatpush1.msra.mxu0 0.0
  %1036 = vmatprep.subr.mxu0 0.0
  %1037 = vmatpush1.msra.mxu0 0.0
  %1038 = vmatprep.subr.mxu0 0.0
  %1039 = vmatpush1.msra.mxu0 0.0
  %1040 = vmatprep.subr.mxu0 0.0
  %1041 = vmatpush1.msra.mxu0 0.0
  %1042 = vmatprep.subr.mxu0 0.0
  %1043 = vmatpush1.msra.mxu0 0.0
  %1044 = vmatprep.subr.mxu0 0.0
  %1045 = vmatpush1.msra.mxu0 0.0
  %1046 = vmatprep.subr.mxu0 0.0
  %1047 = vmatpush1.msra.mxu0 0.0
  %1048 = vmatprep.subr.mxu0 0.0
  %1049 = vmatpush1.msra.mxu0 0.0
  %1050 = vmatprep.subr.mxu0 0.0
  %1051 = vmatpush1.msra.mxu0 0.0
  %1052 = vmatprep.subr.mxu0 0.0
  %1053 = vmatpush1.msra.mxu0 %v1022
  %1054 = vmatprep.subr.mxu0 0.0
  %1055 = vmatpush1.msra.mxu0 %v1004
  %1056 = vmatprep.subr.mxu0 0.0
  %1057 = vmatpush2.msra.mxu0 0.0
  %1058 = vmatprep.subr.mxu0 0.0
  %1059 = vmatpush2.msra.mxu0 0.0
  %1060 = vmatprep.subr.mxu0 0.0
  %1061 = vmatpush2.msra.mxu0 0.0
  %1062 = vmatprep.subr.mxu0 0.0
  %1063 = vmatpush2.msra.mxu0 0.0
  %1064 = vmatprep.subr.mxu0 0.0
  %1065 = vmatpush2.msra.mxu0 0.0
  %1066 = vmatprep.subr.mxu0 0.0
  %1067 = vmatpush2.msra.mxu0 0.0
  %1068 = vmatprep.subr.mxu0 0.0
  %1069 = vmatpush2.msra.mxu0 0.0
  %1070 = vmatprep.subr.mxu0 0.0
  %1071 = vmatpush2.msra.mxu0 0.0
  %1072 = vmatprep.subr.mxu0 0.0
  %1073 = vmatpush2.msra.mxu0 0.0
  %1074 = vmatprep.subr.mxu0 0.0
  %1075 = vmatpush2.msra.mxu0 0.0
  %1076 = vmatprep.subr.mxu0 0.0
  %1077 = vmatpush2.msra.mxu0 0.0
  %1078 = vmatprep.subr.mxu0 0.0
  %1079 = vmatpush2.msra.mxu0 0.0
  %1080 = vmatprep.subr.mxu0 0.0
  %1081 = vmatpush2.msra.mxu0 0.0
  %1082 = vmatprep.subr.mxu0 0.0
  %1083 = vmatpush2.msra.mxu0 0.0
  %1084 = vmatprep.subr.mxu0 0.0
  %1085 = vmatpush2.msra.mxu0 0.0
  %1086 = vmatprep.subr.mxu0 0.0
  %1087 = vmatpush2.msra.mxu0 0.0
  %1088 = vmatprep.mubr.f32.mxu0 0.0
  %1089 = vmatmul.mubr.f32.gmra.mxu0 %v1015
  %v1090 = vpop.f32.mrf.mxu0
  %v1091 = vadd.f32 %v1011, %v1090
  %v1092 = vpop.f32.mrf.mxu0
  %1093 = vmatprep.mubr.f32.mxu0 0.0
  %1094 = vmatmul.mubr.f32.gmra.mxu0 %v1018
  %v1095 = vpop.f32.mrf.mxu0
  %v1096 = vadd.f32 %v1011, %v1095
  %v1097 = vpop.f32.mrf.mxu0
  %1098 = vdwg.mxu0
  %vm1099 = vcmask 7168
  %1100 = vst.msk [vmem:[%s14] sm:$0xff] %vm1099, %v1091
  %1101 = vst.msk [vmem:[%s14 + $0x8] sm:$0xff] %vm1099, %v1096
  // Predicated region
  $region58: #{stgcn_forward.1} parent=0 // pred_check
    _
  $region59: #{stgcn_forward.1} parent=0 // pred_check_branch
    %1103 = sbr.rel (0) target = $region61
  $region60: #{stgcn_forward.1} parent=0 // pred_region
    _
  $region61: #{stgcn_forward.1} parent=0 // pred_fallthru
    _
  // Predicated region
  $region62: #{stgcn_forward.1} parent=0 // pred_check
    _
  $region63: #{stgcn_forward.1} parent=0 // pred_check_branch
    %1105 = sbr.rel (0) target = $region65
  $region64: #{stgcn_forward.1} parent=0 // pred_region
    _
  $region65: #{stgcn_forward.1} parent=0 // pred_fallthru
    _

</llo_original>
